<compile_context>
chip_gen: v6e
topology: v6e:2x2x1
jax: 0.10.0
libtpu: 0.0.40
codegen_flags: <defaults>
</compile_context>

<pallas_src>
from functools import partial

import jax
import jax.numpy as jnp
from jax import lax
from jax.experimental import pallas as pl
from jax.experimental.pallas import tpu as pltpu

WINDOW_SIZE = 11
SIGMA = 1.5
C1 = 0.01 ** 2
C2 = 0.03 ** 2


def _round_up(x, m):
    return ((x + m - 1) // m) * m


def _gauss_1d(window_size=WINDOW_SIZE, sigma=SIGMA):
    xs = jnp.arange(window_size, dtype=jnp.float32)
    g = jnp.exp(-((xs - window_size // 2) ** 2) / (2.0 * sigma ** 2))
    return g / jnp.sum(g)


def _band_matrix(n, g, window_size=WINDOW_SIZE):
    """KH[i, k] = g[k - i + ws//2] (zero outside the band).

    Row conv with zero 'same' padding:  (KH @ X)[i, j] = sum_u X[i+u-5, j] g[u].
    """
    half = window_size // 2
    i = jnp.arange(n)[:, None]
    k = jnp.arange(n)[None, :]
    d = k - i + half
    valid = (d >= 0) & (d < window_size)
    return jnp.where(valid, g[jnp.clip(d, 0, window_size - 1)], 0.0).astype(jnp.float32)


def _choose_tb(b, h_pad, w_pad, in_itemsize, budget_bytes=10 * 1024 * 1024):
    """Images per grid step: biggest TB whose working set fits a VMEM budget
    (conservative so the default/explicit scoped-VMEM limits hold on v5e..v7x)."""
    per_image = (h_pad * w_pad * (4 * in_itemsize + 12 * 4 + 3 * 2)
                 + 2 * h_pad * h_pad)                       # temps + broadcast KH
    fixed = 4 * 2 * (h_pad * h_pad + w_pad * w_pad)          # double-buffered KH/KW
    avail = max(budget_bytes - fixed, per_image)
    return int(max(1, min(avail // per_image, 16, b)))


def _sod_ssim_kernel(pred_ref, label_ref, kh_ref, kw_ref, out_ref, *,
                     tb, h, w, h_pad, w_pad, matmul_dtype):
    # (tb, h_pad, w_pad) image blocks; upcast in-kernel (inputs may be bf16).
    p = jax.nn.sigmoid(pred_ref[...].astype(jnp.float32))
    t = label_ref[...].astype(jnp.float32)

    hw_mask = None
    if (h_pad != h) or (w_pad != w):
        ri = lax.broadcasted_iota(jnp.int32, (h_pad, w_pad), 0)
        ci = lax.broadcasted_iota(jnp.int32, (h_pad, w_pad), 1)
        hw_mask = (ri < h) & (ci < w)
        # Zero the spatial pad region of BOTH maps so the banded matmuls
        # reproduce the conv's zero 'same' padding exactly.
        p = jnp.where(hw_mask[None], p, 0.0)
        t = jnp.where(hw_mask[None], t, 0.0)

    # Hoisted once per grid step and reused by all 6 convs.
    kh_b = jnp.broadcast_to(kh_ref[...][None], (tb, h_pad, h_pad))
    kw = kw_ref[...]                                        # (w_pad, w_pad)

    def conv(x):
        # Separable 11x11 Gaussian, zero 'same' padding -> two MXU matmuls
        # (bf16 operands, f32 accumulation).
        xm = x.astype(matmul_dtype)
        r = jnp.einsum('bik,bkj->bij', kh_b, xm,
                       preferred_element_type=jnp.float32)            # height conv
        r2 = r.reshape(tb * h_pad, w_pad).astype(matmul_dtype)         # free reshape
        y = jnp.dot(r2, kw, preferred_element_type=jnp.float32)        # width conv
        return y.reshape(tb, h_pad, w_pad)

    mu1 = conv(p)
    mu2 = conv(t)
    mu1_sq = mu1 * mu1
    mu2_sq = mu2 * mu2
    mu1_mu2 = mu1 * mu2
    sigma1_sq = conv(p * p) - mu1_sq
    sigma2_sq = conv(t * t) - mu2_sq
    sigma12 = conv(p * t) - mu1_mu2

    num = (2.0 * mu1_mu2 + C1) * (2.0 * sigma12 + C2)
    den = (mu1_sq + mu2_sq + C1) * (sigma1_sq + sigma2_sq + C2)
    loss_map = 1.0 - num / den

    if hw_mask is not None:
        loss_map = jnp.where(hw_mask[None], loss_map, 0.0)

    # Lane-dense per-step partial sums: only tile-wise VPU adds here (no
    # in-kernel cross-lane reduction, no carried accumulator -> grid axis stays
    # "parallel" for v7x megacore).
    out_ref[...] = jnp.sum(loss_map.reshape(tb * h_pad // 8, 8, w_pad), axis=0)


def sod_ssim_loss(pred, label, *, loss_weight=1.0, matmul_dtype=jnp.bfloat16):
    """SSIM loss (window=11, sigma=1.5, size_average=True, reduction='mean').

    pred/label: (N, C, H, W) or (N, H, W).  The module's Gaussian window is
    built for a single-channel depthwise conv, so C is folded into the batch.
    Set matmul_dtype=jnp.float32 for full-precision (slower) convolutions.
    """
    if pred.ndim == 3:
        pred = pred[:, None]
    if label.ndim == 3:
        label = label[:, None]
    n, c, h, w = pred.shape
    b = n * c
    pred = pred.reshape(b, h, w)
    label = label.reshape(b, h, w)
    if not jnp.issubdtype(pred.dtype, jnp.floating):
        pred = pred.astype(jnp.float32)
    if not jnp.issubdtype(label.dtype, jnp.floating):
        label = label.astype(jnp.float32)

    # TODO(synk): for very large images (H, W >~ 768) add spatial tiling with an
    # 11-pixel halo (or block-tridiagonal band matmuls) instead of dense
    # (H,H)/(W,W) band matrices, so one block still fits v7x's 64 MiB VMEM.
    h_pad = _round_up(h, 8)
    w_pad = _round_up(w, 128)
    in_itemsize = max(pred.dtype.itemsize, label.dtype.itemsize)
    tb = _choose_tb(b, h_pad, w_pad, in_itemsize)
    num_blocks = -(-b // tb)
    b_pad = num_blocks * tb

    # Spatial zero padding == the conv's zero 'same' padding (masked out of the
    # loss sum in-kernel).  Batch padding: pred=0 (sigmoid -> 0.5), label=0.5,
    # so padded images have p == t exactly, ssim == 1, zero loss contribution.
    spad = ((0, 0), (0, h_pad - h), (0, w_pad - w))
    pred_p = jnp.pad(pred, spad)
    label_p = jnp.pad(label, spad)
    if b_pad > b:
        bpad = ((0, b_pad - b), (0, 0), (0, 0))
        pred_p = jnp.pad(pred_p, bpad)
        label_p = jnp.pad(label_p, bpad, constant_values=0.5)

    g = _gauss_1d()
    kh = _band_matrix(h_pad, g).astype(matmul_dtype)        # height-conv matrix
    kw = _band_matrix(w_pad, g).T.astype(matmul_dtype)      # width-conv matrix

    kernel = partial(_sod_ssim_kernel, tb=tb, h=h, w=w, h_pad=h_pad, w_pad=w_pad,
                     matmul_dtype=matmul_dtype)

    matmul_flops = 6 * 2 * b_pad * h_pad * w_pad * (h_pad + w_pad)
    cost = pl.CostEstimate(
        flops=int(matmul_flops + 40 * b_pad * h_pad * w_pad),
        transcendentals=int(b_pad * h_pad * w_pad),
        bytes_accessed=int(pred_p.size * pred_p.dtype.itemsize
                           + label_p.size * label_p.dtype.itemsize
                           + (kh.size + kw.size) * kh.dtype.itemsize
                           + num_blocks * 8 * w_pad * 4),
    )

    partials = pl.pallas_call(
        kernel,
        out_shape=jax.ShapeDtypeStruct((num_blocks * 8, w_pad), jnp.float32),
        grid_spec=pltpu.PrefetchScalarGridSpec(
            num_scalar_prefetch=0,
            grid=(num_blocks,),
            in_specs=[
                pl.BlockSpec((tb, h_pad, w_pad), lambda i: (i, 0, 0)),
                pl.BlockSpec((tb, h_pad, w_pad), lambda i: (i, 0, 0)),
                pl.BlockSpec((h_pad, h_pad), lambda i: (0, 0)),
                pl.BlockSpec((w_pad, w_pad), lambda i: (0, 0)),
            ],
            out_specs=pl.BlockSpec((8, w_pad), lambda i: (i, 0)),
        ),
        compiler_params=pltpu.CompilerParams(
            dimension_semantics=("parallel",),
            vmem_limit_bytes=48 * 1024 * 1024,
        ),
        cost_estimate=cost,
    )(pred_p, label_p, kh, kw)

    return jnp.sum(partials) * (loss_weight / float(b * h * w))


def _reference_loss(pred, label, loss_weight=1.0):
    """Pure-JAX f32 reference (same math as the PyTorch module)."""
    if pred.ndim == 3:
        pred = pred[:, None]
    if label.ndim == 3:
        label = label[:, None]
    n, c, h, w = pred.shape
    p = jax.nn.sigmoid(pred.astype(jnp.float32)).reshape(n * c, 1, h, w)
    t = label.astype(jnp.float32).reshape(n * c, 1, h, w)
    g = _gauss_1d()
    win = (g[:, None] * g[None, :])[None, None]             # (1, 1, 11, 11)
    pad = WINDOW_SIZE // 2

    def conv(x):
        return lax.conv_general_dilated(
            x, win, (1, 1), ((pad, pad), (pad, pad)),
            dimension_numbers=('NCHW', 'OIHW', 'NCHW'))

    mu1, mu2 = conv(p), conv(t)
    mu1_sq, mu2_sq, mu1_mu2 = mu1 * mu1, mu2 * mu2, mu1 * mu2
    s1 = conv(p * p) - mu1_sq
    s2 = conv(t * t) - mu2_sq
    s12 = conv(p * t) - mu1_mu2
    ssim = ((2 * mu1_mu2 + C1) * (2 * s12 + C2)) / ((mu1_sq + mu2_sq + C1) * (s1 + s2 + C2))
    return loss_weight * jnp.mean(1.0 - ssim)


if __name__ == "__main__":
    key = jax.random.PRNGKey(0)
    k1, k2 = jax.random.split(key)
    # module's window is for a channel=1 depthwise conv -> C=1
    pred = jax.random.normal(k1, (2, 1, 16, 16), dtype=jnp.float32)
    label = (jax.random.uniform(k2, (2, 1, 16, 16), dtype=jnp.float32) > 0.5
             ).astype(jnp.float32)

    loss = jax.jit(sod_ssim_loss)(pred, label)
    jax.block_until_ready(loss)

    ref = _reference_loss(pred, label, loss_weight=1.0)
    jax.block_until_ready(ref)
    if not abs(float(loss) - float(ref)) <= 5e-2 * abs(float(ref)) + 1e-2:
        raise RuntimeError(f"mismatch: kernel={float(loss)} ref={float(ref)}")

    print("KERNEL_OK")
</pallas_src>

<mosaic_0001>
module attributes {stable_mosaic.version = 11 : i64} {
  func.func @_sod_ssim_kernel(%arg0: i32, %arg1: memref<2x16x128xf32, #tpu.memory_space<vmem>>, %arg2: memref<2x16x128xf32, #tpu.memory_space<vmem>>, %arg3: memref<16x16xbf16, #tpu.memory_space<vmem>>, %arg4: memref<128x128xbf16, #tpu.memory_space<vmem>>, %arg5: memref<8x128xf32, #tpu.memory_space<vmem>>) attributes {dimension_semantics = [#tpu.dimension_semantics<parallel>], iteration_bounds = array<i64: 1>, scalar_prefetch = 0 : i64, scratch_operands = 0 : i64, tpu.core_type = #tpu.core_type<tc>, window_params = [{transform_indices = @transform_0, window_bounds = array<i64: 2, 16, 128>}, {transform_indices = @transform_1, window_bounds = array<i64: 2, 16, 128>}, {pipeline_mode = #tpu.pipeline_mode<synchronous>, transform_indices = @transform_2, window_bounds = array<i64: 16, 16>}, {pipeline_mode = #tpu.pipeline_mode<synchronous>, transform_indices = @transform_3, window_bounds = array<i64: 128, 128>}, {transform_indices = @transform_4, window_bounds = array<i64: 8, 128>}]} {
    %c0 = arith.constant 0 : index
    %c0_0 = arith.constant 0 : index
    %c0_1 = arith.constant 0 : index
    %0 = vector.load %arg1[%c0, %c0_0, %c0_1] : memref<2x16x128xf32, #tpu.memory_space<vmem>>, vector<2x16x128xf32>
    %1 = arith.negf %0 : vector<2x16x128xf32>
    %2 = math.exp %1 : vector<2x16x128xf32>
    %cst = arith.constant 1.000000e+00 : f32
    %3 = vector.broadcast %cst : f32 to vector<2x16x128xf32>
    %4 = arith.addf %3, %2 : vector<2x16x128xf32>
    %5 = arith.divf %3, %4 : vector<2x16x128xf32>
    %c0_2 = arith.constant 0 : index
    %c0_3 = arith.constant 0 : index
    %c0_4 = arith.constant 0 : index
    %6 = vector.load %arg2[%c0_2, %c0_3, %c0_4] : memref<2x16x128xf32, #tpu.memory_space<vmem>>, vector<2x16x128xf32>
    %7 = tpu.iota {dimensions = array<i32: 0>} : vector<16x128xi32>
    %8 = tpu.iota {dimensions = array<i32: 1>} : vector<16x128xi32>
    %c16_i32 = arith.constant 16 : i32
    %9 = vector.broadcast %c16_i32 : i32 to vector<16x128xi32>
    %10 = arith.cmpi slt, %7, %9 : vector<16x128xi32>
    %c16_i32_5 = arith.constant 16 : i32
    %11 = vector.broadcast %c16_i32_5 : i32 to vector<16x128xi32>
    %12 = arith.cmpi slt, %8, %11 : vector<16x128xi32>
    %13 = arith.andi %10, %12 : vector<16x128xi1>
    %14 = vector.shape_cast %13 : vector<16x128xi1> to vector<1x16x128xi1>
    %cst_6 = arith.constant 0.000000e+00 : f32
    %15 = vector.shape_cast %14 : vector<1x16x128xi1> to vector<1x16x128xi1>
    %16 = vector.broadcast %15 : vector<1x16x128xi1> to vector<2x16x128xi1>
    %17 = vector.broadcast %cst_6 : f32 to vector<2x16x128xf32>
    %18 = arith.select %16, %5, %17 : vector<2x16x128xi1>, vector<2x16x128xf32>
    %19 = vector.shape_cast %13 : vector<16x128xi1> to vector<1x16x128xi1>
    %cst_7 = arith.constant 0.000000e+00 : f32
    %20 = vector.shape_cast %19 : vector<1x16x128xi1> to vector<1x16x128xi1>
    %21 = vector.broadcast %20 : vector<1x16x128xi1> to vector<2x16x128xi1>
    %22 = vector.broadcast %cst_7 : f32 to vector<2x16x128xf32>
    %23 = arith.select %21, %6, %22 : vector<2x16x128xi1>, vector<2x16x128xf32>
    %c0_8 = arith.constant 0 : index
    %c0_9 = arith.constant 0 : index
    %24 = vector.load %arg3[%c0_8, %c0_9] : memref<16x16xbf16, #tpu.memory_space<vmem>>, vector<16x16xbf16>
    %25 = vector.shape_cast %24 : vector<16x16xbf16> to vector<1x16x16xbf16>
    %26 = vector.shape_cast %25 : vector<1x16x16xbf16> to vector<1x16x16xbf16>
    %27 = vector.broadcast %26 : vector<1x16x16xbf16> to vector<2x16x16xbf16>
    %c0_10 = arith.constant 0 : index
    %c0_11 = arith.constant 0 : index
    %28 = vector.load %arg4[%c0_10, %c0_11] : memref<128x128xbf16, #tpu.memory_space<vmem>>, vector<128x128xbf16>
    %29 = arith.truncf %18 : vector<2x16x128xf32> to vector<2x16x128xbf16>
    "tpu.trace_start"() <{level = 10 : i32, message = "bik,bkj->bij"}> : () -> ()
    %cst_12 = arith.constant dense<0.000000e+00> : vector<2x16x128xf32>
    %30 = tpu.matmul %27, %29, %cst_12 {dimension_numbers = #tpu.dot_dimension_numbers<[2], [1], [1], [2], [0, 0, 0, 1, 1, 2], [0], [0]>} : vector<2x16x16xbf16>, vector<2x16x128xbf16>, vector<2x16x128xf32> -> vector<2x16x128xf32>
    "tpu.trace_stop"() : () -> ()
    %31 = vector.shape_cast %30 : vector<2x16x128xf32> to vector<32x128xf32>
    %32 = arith.truncf %31 : vector<32x128xf32> to vector<32x128xbf16>
    %cst_13 = arith.constant dense<0.000000e+00> : vector<32x128xf32>
    %33 = tpu.matmul %32, %28, %cst_13 {dimension_numbers = #tpu.dot_dimension_numbers<[1], [0], [0], [1], [0, 0, 1, 1], [], []>} : vector<32x128xbf16>, vector<128x128xbf16>, vector<32x128xf32> -> vector<32x128xf32>
    %34 = vector.shape_cast %33 : vector<32x128xf32> to vector<2x16x128xf32>
    %35 = arith.truncf %23 : vector<2x16x128xf32> to vector<2x16x128xbf16>
    "tpu.trace_start"() <{level = 10 : i32, message = "bik,bkj->bij"}> : () -> ()
    %cst_14 = arith.constant dense<0.000000e+00> : vector<2x16x128xf32>
    %36 = tpu.matmul %27, %35, %cst_14 {dimension_numbers = #tpu.dot_dimension_numbers<[2], [1], [1], [2], [0, 0, 0, 1, 1, 2], [0], [0]>} : vector<2x16x16xbf16>, vector<2x16x128xbf16>, vector<2x16x128xf32> -> vector<2x16x128xf32>
    "tpu.trace_stop"() : () -> ()
    %37 = vector.shape_cast %36 : vector<2x16x128xf32> to vector<32x128xf32>
    %38 = arith.truncf %37 : vector<32x128xf32> to vector<32x128xbf16>
    %cst_15 = arith.constant dense<0.000000e+00> : vector<32x128xf32>
    %39 = tpu.matmul %38, %28, %cst_15 {dimension_numbers = #tpu.dot_dimension_numbers<[1], [0], [0], [1], [0, 0, 1, 1], [], []>} : vector<32x128xbf16>, vector<128x128xbf16>, vector<32x128xf32> -> vector<32x128xf32>
    %40 = vector.shape_cast %39 : vector<32x128xf32> to vector<2x16x128xf32>
    %41 = arith.mulf %34, %34 : vector<2x16x128xf32>
    %42 = arith.mulf %40, %40 : vector<2x16x128xf32>
    %43 = arith.mulf %34, %40 : vector<2x16x128xf32>
    %44 = arith.mulf %18, %18 : vector<2x16x128xf32>
    %45 = arith.truncf %44 : vector<2x16x128xf32> to vector<2x16x128xbf16>
    "tpu.trace_start"() <{level = 10 : i32, message = "bik,bkj->bij"}> : () -> ()
    %cst_16 = arith.constant dense<0.000000e+00> : vector<2x16x128xf32>
    %46 = tpu.matmul %27, %45, %cst_16 {dimension_numbers = #tpu.dot_dimension_numbers<[2], [1], [1], [2], [0, 0, 0, 1, 1, 2], [0], [0]>} : vector<2x16x16xbf16>, vector<2x16x128xbf16>, vector<2x16x128xf32> -> vector<2x16x128xf32>
    "tpu.trace_stop"() : () -> ()
    %47 = vector.shape_cast %46 : vector<2x16x128xf32> to vector<32x128xf32>
    %48 = arith.truncf %47 : vector<32x128xf32> to vector<32x128xbf16>
    %cst_17 = arith.constant dense<0.000000e+00> : vector<32x128xf32>
    %49 = tpu.matmul %48, %28, %cst_17 {dimension_numbers = #tpu.dot_dimension_numbers<[1], [0], [0], [1], [0, 0, 1, 1], [], []>} : vector<32x128xbf16>, vector<128x128xbf16>, vector<32x128xf32> -> vector<32x128xf32>
    %50 = vector.shape_cast %49 : vector<32x128xf32> to vector<2x16x128xf32>
    %51 = arith.subf %50, %41 : vector<2x16x128xf32>
    %52 = arith.mulf %23, %23 : vector<2x16x128xf32>
    %53 = arith.truncf %52 : vector<2x16x128xf32> to vector<2x16x128xbf16>
    "tpu.trace_start"() <{level = 10 : i32, message = "bik,bkj->bij"}> : () -> ()
    %cst_18 = arith.constant dense<0.000000e+00> : vector<2x16x128xf32>
    %54 = tpu.matmul %27, %53, %cst_18 {dimension_numbers = #tpu.dot_dimension_numbers<[2], [1], [1], [2], [0, 0, 0, 1, 1, 2], [0], [0]>} : vector<2x16x16xbf16>, vector<2x16x128xbf16>, vector<2x16x128xf32> -> vector<2x16x128xf32>
    "tpu.trace_stop"() : () -> ()
    %55 = vector.shape_cast %54 : vector<2x16x128xf32> to vector<32x128xf32>
    %56 = arith.truncf %55 : vector<32x128xf32> to vector<32x128xbf16>
    %cst_19 = arith.constant dense<0.000000e+00> : vector<32x128xf32>
    %57 = tpu.matmul %56, %28, %cst_19 {dimension_numbers = #tpu.dot_dimension_numbers<[1], [0], [0], [1], [0, 0, 1, 1], [], []>} : vector<32x128xbf16>, vector<128x128xbf16>, vector<32x128xf32> -> vector<32x128xf32>
    %58 = vector.shape_cast %57 : vector<32x128xf32> to vector<2x16x128xf32>
    %59 = arith.subf %58, %42 : vector<2x16x128xf32>
    %60 = arith.mulf %18, %23 : vector<2x16x128xf32>
    %61 = arith.truncf %60 : vector<2x16x128xf32> to vector<2x16x128xbf16>
    "tpu.trace_start"() <{level = 10 : i32, message = "bik,bkj->bij"}> : () -> ()
    %cst_20 = arith.constant dense<0.000000e+00> : vector<2x16x128xf32>
    %62 = tpu.matmul %27, %61, %cst_20 {dimension_numbers = #tpu.dot_dimension_numbers<[2], [1], [1], [2], [0, 0, 0, 1, 1, 2], [0], [0]>} : vector<2x16x16xbf16>, vector<2x16x128xbf16>, vector<2x16x128xf32> -> vector<2x16x128xf32>
    "tpu.trace_stop"() : () -> ()
    %63 = vector.shape_cast %62 : vector<2x16x128xf32> to vector<32x128xf32>
    %64 = arith.truncf %63 : vector<32x128xf32> to vector<32x128xbf16>
    %cst_21 = arith.constant dense<0.000000e+00> : vector<32x128xf32>
    %65 = tpu.matmul %64, %28, %cst_21 {dimension_numbers = #tpu.dot_dimension_numbers<[1], [0], [0], [1], [0, 0, 1, 1], [], []>} : vector<32x128xbf16>, vector<128x128xbf16>, vector<32x128xf32> -> vector<32x128xf32>
    %66 = vector.shape_cast %65 : vector<32x128xf32> to vector<2x16x128xf32>
    %67 = arith.subf %66, %43 : vector<2x16x128xf32>
    %cst_22 = arith.constant 2.000000e+00 : f32
    %68 = vector.broadcast %cst_22 : f32 to vector<2x16x128xf32>
    %69 = arith.mulf %68, %43 : vector<2x16x128xf32>
    %cst_23 = arith.constant 9.99999974E-5 : f32
    %70 = vector.broadcast %cst_23 : f32 to vector<2x16x128xf32>
    %71 = arith.addf %69, %70 : vector<2x16x128xf32>
    %cst_24 = arith.constant 2.000000e+00 : f32
    %72 = vector.broadcast %cst_24 : f32 to vector<2x16x128xf32>
    %73 = arith.mulf %72, %67 : vector<2x16x128xf32>
    %cst_25 = arith.constant 8.99999984E-4 : f32
    %74 = vector.broadcast %cst_25 : f32 to vector<2x16x128xf32>
    %75 = arith.addf %73, %74 : vector<2x16x128xf32>
    %76 = arith.mulf %71, %75 : vector<2x16x128xf32>
    %77 = arith.addf %41, %42 : vector<2x16x128xf32>
    %cst_26 = arith.constant 9.99999974E-5 : f32
    %78 = vector.broadcast %cst_26 : f32 to vector<2x16x128xf32>
    %79 = arith.addf %77, %78 : vector<2x16x128xf32>
    %80 = arith.addf %51, %59 : vector<2x16x128xf32>
    %cst_27 = arith.constant 8.99999984E-4 : f32
    %81 = vector.broadcast %cst_27 : f32 to vector<2x16x128xf32>
    %82 = arith.addf %80, %81 : vector<2x16x128xf32>
    %83 = arith.mulf %79, %82 : vector<2x16x128xf32>
    %84 = arith.divf %76, %83 : vector<2x16x128xf32>
    %cst_28 = arith.constant 1.000000e+00 : f32
    %85 = vector.broadcast %cst_28 : f32 to vector<2x16x128xf32>
    %86 = arith.subf %85, %84 : vector<2x16x128xf32>
    %87 = vector.shape_cast %13 : vector<16x128xi1> to vector<1x16x128xi1>
    %cst_29 = arith.constant 0.000000e+00 : f32
    %88 = vector.shape_cast %87 : vector<1x16x128xi1> to vector<1x16x128xi1>
    %89 = vector.broadcast %88 : vector<1x16x128xi1> to vector<2x16x128xi1>
    %90 = vector.broadcast %cst_29 : f32 to vector<2x16x128xf32>
    %91 = arith.select %89, %86, %90 : vector<2x16x128xi1>, vector<2x16x128xf32>
    %92 = vector.shape_cast %91 : vector<2x16x128xf32> to vector<4x8x128xf32>
    %cst_30 = arith.constant dense<0.000000e+00> : vector<8x128xf32>
    %93 = vector.multi_reduction <add>, %92, %cst_30 [0] : vector<4x8x128xf32> to vector<8x128xf32>
    %c0_31 = arith.constant 0 : index
    %c0_32 = arith.constant 0 : index
    %94 = vector.load %arg5[%c0_31, %c0_32] : memref<8x128xf32, #tpu.memory_space<vmem>>, vector<8x128xf32>
    tpu.vector_store %arg5[%c0_31, %c0_32], %93 {strides = array<i32>} : memref<8x128xf32, #tpu.memory_space<vmem>>, vector<8x128xf32>,
    return
  }
  func.func @transform_0(%arg0: i32) -> (i32, i32, i32) {
    %c0_i32 = arith.constant 0 : i32
    %c0_i32_0 = arith.constant 0 : i32
    %c0_i32_1 = arith.constant 0 : i32
    return %arg0, %c0_i32, %c0_i32_0 : i32, i32, i32
  }
  func.func @transform_1(%arg0: i32) -> (i32, i32, i32) {
    %c0_i32 = arith.constant 0 : i32
    %c0_i32_0 = arith.constant 0 : i32
    %c0_i32_1 = arith.constant 0 : i32
    return %arg0, %c0_i32, %c0_i32_0 : i32, i32, i32
  }
  func.func @transform_2(%arg0: i32) -> (i32, i32) {
    %c0_i32 = arith.constant 0 : i32
    %c0_i32_0 = arith.constant 0 : i32
    %c0_i32_1 = arith.constant 0 : i32
    return %c0_i32, %c0_i32_0 : i32, i32
  }
  func.func @transform_3(%arg0: i32) -> (i32, i32) {
    %c0_i32 = arith.constant 0 : i32
    %c0_i32_0 = arith.constant 0 : i32
    %c0_i32_1 = arith.constant 0 : i32
    return %c0_i32, %c0_i32_0 : i32, i32
  }
  func.func @transform_4(%arg0: i32) -> (i32, i32) {
    %c0_i32 = arith.constant 0 : i32
    %c0_i32_0 = arith.constant 0 : i32
    return %arg0, %c0_i32 : i32, i32
  }
}

</mosaic_0001>

<llo_original>
// kernel: sod_ssim_loss.1
$region0: #{sod_ssim_loss.1}
  #allocation0 [shape = 'u32[]', space=smem, size = 0x4, offset = 0x4, fixed_abs, tag = 'smem constant byte address 0x4 - core index']
  #allocation1 [shape = 'u32[144,128]{1,0:T(1,128)}', space=vmem, size = 0x12000, scoped, tag = 'internal scratch']
  %s0 = inlined_call_operand.vmem [shape: f32[2,16,128], index: 0, kind: input, shape index: {}]
  %s1 = inlined_call_operand.vmem [shape: f32[2,16,128], index: 1, kind: input, shape index: {}]
  %s2 = inlined_call_operand.vmem [shape: bf16[16,16], index: 2, kind: input, shape index: {}]
  %s3 = inlined_call_operand.vmem [shape: bf16[128,128], index: 3, kind: input, shape index: {}]
  %s4 = inlined_call_operand.vmem [shape: f32[8,128], index: 4, kind: output, shape index: {}]
  %s5 = sld [smem:[#allocation0]]
  $region26: #{sod_ssim_loss.1} parent=0
    _
  %s7 = ssub.s32 1, %s5
  %s8 = scalar_select 0, %s7, %s5
  // Predicated region
  $region2: #{sod_ssim_loss.1} parent=0 // pred_check
    _
  $region3: #{sod_ssim_loss.1} parent=0 // pred_check_branch
    %10 = sbr.rel (0) target = $region5
  $region4: #{sod_ssim_loss.1} parent=0 // pred_region
    _
  $region5: #{sod_ssim_loss.1} parent=0 // pred_fallthru
    _
  // Predicated region
  $region6: #{sod_ssim_loss.1} parent=0 // pred_check
    _
  $region7: #{sod_ssim_loss.1} parent=0 // pred_check_branch
    %12 = sbr.rel (0) target = $region9
  $region8: #{sod_ssim_loss.1} parent=0 // pred_region
    _
  $region9: #{sod_ssim_loss.1} parent=0 // pred_fallthru
    _
  // Predicated region
  $region10: #{sod_ssim_loss.1} parent=0 // pred_check
    _
  $region11: #{sod_ssim_loss.1} parent=0 // pred_check_branch
    %14 = sbr.rel (0) target = $region13
  $region12: #{sod_ssim_loss.1} parent=0 // pred_region
    _
  $region13: #{sod_ssim_loss.1} parent=0 // pred_fallthru
    _
  // Predicated region
  $region14: #{sod_ssim_loss.1} parent=0 // pred_check
    _
  $region15: #{sod_ssim_loss.1} parent=0 // pred_check_branch
    %16 = sbr.rel (0) target = $region17
  $region16: #{sod_ssim_loss.1} parent=0 // pred_region
    _
  $region17: #{sod_ssim_loss.1} parent=0 // pred_fallthru
    _
  %v18 = vld [vmem:[%s0] sm:$0xff]
  %v19 = vld [vmem:[%s0 + $0x8] sm:$0xff]
  %v20 = vld [vmem:[%s0 + $0x10] sm:$0xff]
  %v21 = vld [vmem:[%s0 + $0x18] sm:$0xff]
  %v22 = vxor.u32 %v18, 2147483648
  %v23 = vxor.u32 %v19, 2147483648
  %v24 = vxor.u32 %v20, 2147483648
  %v25 = vxor.u32 %v21, 2147483648
  %v26 = vmul.f32 %v22, 1.442695
  %v27 = vpow.pop %v26
  %v28 = vmul.f32 %v23, 1.442695
  %v29 = vpow.pop %v28
  %v30 = vmul.f32 %v24, 1.442695
  %v31 = vpow.pop %v30
  %v32 = vmul.f32 %v25, 1.442695
  %v33 = vpow.pop %v32
  %v34 = vadd.f32 %v27, 1.0
  %v35 = vadd.f32 %v29, 1.0
  %v36 = vadd.f32 %v31, 1.0
  %v37 = vadd.f32 %v33, 1.0
  %v38 = vrcp.pop %v34
  %v39 = vmul.f32 1.0, %v38
  %v40 = vrcp.pop %v35
  %v41 = vmul.f32 1.0, %v40
  %v42 = vrcp.pop %v36
  %v43 = vmul.f32 1.0, %v42
  %v44 = vrcp.pop %v37
  %v45 = vmul.f32 1.0, %v44
  %v46 = vld [vmem:[%s1] sm:$0xff]
  %v47 = vld [vmem:[%s1 + $0x8] sm:$0xff]
  %v48 = vld [vmem:[%s1 + $0x10] sm:$0xff]
  %v49 = vld [vmem:[%s1 + $0x18] sm:$0xff]
  %v50 = vlaneseq
  %v51 = vshrl.u32 %v50, 7
  %v52 = vadd.s32 %v51, 8
  %v53 = vlaneseq
  %v54 = vand.u32 %v53, 127
  %vm55 = vcmp.lt.s32.totalorder %v51, 16
  %vm56 = vcmp.lt.s32.totalorder %v52, 16
  %vm57 = vcmp.lt.s32.totalorder %v54, 16
  %vm58 = vmand %vm55, %vm57
  %vm59 = vmand %vm56, %vm57
  %v60 = vsel %vm58, 1, 0
  %v61 = vsel %vm59, 1, 0
  %vm62 = vcmp.eq.s32.totalorder %v60, 1
  %vm63 = vcmp.eq.s32.totalorder %v61, 1
  %v64 = vsel %vm62, %v39, 0.0
  %v65 = vsel %vm63, %v41, 0.0
  %v66 = vsel %vm62, %v43, 0.0
  %v67 = vsel %vm63, %v45, 0.0
  %v68 = vsel %vm62, %v46, 0.0
  %v69 = vsel %vm63, %v47, 0.0
  %v70 = vsel %vm62, %v48, 0.0
  %v71 = vsel %vm63, %v49, 0.0
  %v72 = vld [vmem:[%s2] sm:$0xf]
  %v73 = vld [vmem:[%s2 + $0x4] sm:$0xf]
  %v74 = vld [vmem:[%s3] sm:$0xf]
  %v75 = vld [vmem:[%s3 + $0x4] sm:$0xf]
  %v76 = vld [vmem:[%s3 + $0x8] sm:$0xf]
  %v77 = vld [vmem:[%s3 + $0xc] sm:$0xf]
  %v78 = vld [vmem:[%s3 + $0x10] sm:$0xf]
  %v79 = vld [vmem:[%s3 + $0x14] sm:$0xf]
  %v80 = vld [vmem:[%s3 + $0x18] sm:$0xf]
  %v81 = vld [vmem:[%s3 + $0x1c] sm:$0xf]
  %v82 = vld [vmem:[%s3 + $0x20] sm:$0xf]
  %v83 = vld [vmem:[%s3 + $0x24] sm:$0xf]
  %v84 = vld [vmem:[%s3 + $0x28] sm:$0xf]
  %v85 = vld [vmem:[%s3 + $0x2c] sm:$0xf]
  %v86 = vld [vmem:[%s3 + $0x30] sm:$0xf]
  %v87 = vld [vmem:[%s3 + $0x34] sm:$0xf]
  %v88 = vld [vmem:[%s3 + $0x38] sm:$0xf]
  %v89 = vld [vmem:[%s3 + $0x3c] sm:$0xf]
  %v90 = vpack.c.bf16 %v65, %v64
  %v91 = vpack.c.bf16 %v67, %v66
  %v94 = vunpack.c.l.b16 %v72
  %v95 = vunpack.c.l.b16 %v73
  %v96 = vpack.c.b16 %v95, %v94
  %vm97 = vcmask 130048
  %v99 = vsel %vm97, %v96, 0
  %101 = vmatprep.subr.bf16.mxu0 0
  %102 = vmatpush1.bf16.msra.mxu0 0
  %103 = vmatprep.subr.bf16.mxu0 0
  %104 = vmatpush1.bf16.msra.mxu0 0
  %105 = vmatprep.subr.bf16.mxu0 0
  %106 = vmatpush1.bf16.msra.mxu0 0
  %107 = vmatprep.subr.bf16.mxu0 0
  %108 = vmatpush1.bf16.msra.mxu0 0
  %109 = vmatprep.subr.bf16.mxu0 0
  %110 = vmatpush1.bf16.msra.mxu0 0
  %111 = vmatprep.subr.bf16.mxu0 0
  %112 = vmatpush1.bf16.msra.mxu0 0
  %113 = vmatprep.subr.bf16.mxu0 0
  %114 = vmatpush1.bf16.msra.mxu0 0
  %115 = vmatprep.subr.bf16.mxu0 0
  %116 = vmatpush1.bf16.msra.mxu0 %v90
  %117 = vmatprep.subr.bf16.mxu0 0
  %118 = vmatpush2.bf16.msra.mxu0 0
  %119 = vmatprep.subr.bf16.mxu0 0
  %120 = vmatpush2.bf16.msra.mxu0 0
  %121 = vmatprep.subr.bf16.mxu0 0
  %122 = vmatpush2.bf16.msra.mxu0 0
  %123 = vmatprep.subr.bf16.mxu0 0
  %124 = vmatpush2.bf16.msra.mxu0 0
  %125 = vmatprep.subr.bf16.mxu0 0
  %126 = vmatpush2.bf16.msra.mxu0 0
  %127 = vmatprep.subr.bf16.mxu0 0
  %128 = vmatpush2.bf16.msra.mxu0 0
  %129 = vmatprep.subr.bf16.mxu0 0
  %130 = vmatpush2.bf16.msra.mxu0 0
  %131 = vmatprep.subr.bf16.mxu0 0
  %132 = vmatpush2.bf16.msra.mxu0 0
  %133 = vmatprep.mubr.bf16.mxu0 0
  %134 = vmatmul.mubr.bf16.gmra.mxu0 %v99
  %v135 = vpop.f32.mrf.mxu0
  %v136 = vadd.f32 0.0, %v135
  %v137 = vpop.f32.mrf.mxu0
  %v138 = vpop.f32.mrf.mxu0
  %v139 = vadd.f32 0.0, %v138
  %v140 = vpop.f32.mrf.mxu0
  %141 = vdwg.mxu0
  %142 = vmatprep.subr.bf16.mxu0 0
  %143 = vmatpush1.bf16.msra.mxu0 0
  %144 = vmatprep.subr.bf16.mxu0 0
  %145 = vmatpush1.bf16.msra.mxu0 0
  %146 = vmatprep.subr.bf16.mxu0 0
  %147 = vmatpush1.bf16.msra.mxu0 0
  %148 = vmatprep.subr.bf16.mxu0 0
  %149 = vmatpush1.bf16.msra.mxu0 0
  %150 = vmatprep.subr.bf16.mxu0 0
  %151 = vmatpush1.bf16.msra.mxu0 0
  %152 = vmatprep.subr.bf16.mxu0 0
  %153 = vmatpush1.bf16.msra.mxu0 0
  %154 = vmatprep.subr.bf16.mxu0 0
  %155 = vmatpush1.bf16.msra.mxu0 0
  %156 = vmatprep.subr.bf16.mxu0 0
  %157 = vmatpush1.bf16.msra.mxu0 %v91
  %158 = vmatprep.subr.bf16.mxu0 0
  %159 = vmatpush2.bf16.msra.mxu0 0
  %160 = vmatprep.subr.bf16.mxu0 0
  %161 = vmatpush2.bf16.msra.mxu0 0
  %162 = vmatprep.subr.bf16.mxu0 0
  %163 = vmatpush2.bf16.msra.mxu0 0
  %164 = vmatprep.subr.bf16.mxu0 0
  %165 = vmatpush2.bf16.msra.mxu0 0
  %166 = vmatprep.subr.bf16.mxu0 0
  %167 = vmatpush2.bf16.msra.mxu0 0
  %168 = vmatprep.subr.bf16.mxu0 0
  %169 = vmatpush2.bf16.msra.mxu0 0
  %170 = vmatprep.subr.bf16.mxu0 0
  %171 = vmatpush2.bf16.msra.mxu0 0
  %172 = vmatprep.subr.bf16.mxu0 0
  %173 = vmatpush2.bf16.msra.mxu0 0
  %174 = vmatprep.mubr.bf16.mxu0 0
  %175 = vmatmul.mubr.bf16.gmra.mxu0 %v99
  %v176 = vpop.f32.mrf.mxu0
  %v177 = vadd.f32 0.0, %v176
  %v178 = vpop.f32.mrf.mxu0
  %v179 = vpop.f32.mrf.mxu0
  %v180 = vadd.f32 0.0, %v179
  %v181 = vpop.f32.mrf.mxu0
  %182 = vdwg.mxu0
  %v183 = vpack.c.bf16 %v139, %v136
  %v184 = vpack.c.bf16 %v180, %v177
  %v201 = vunpack.c.l.b16 %v74
  %v202 = vunpack.c.l.b16 %v75
  %v203 = vunpack.c.l.b16 %v76
  %v204 = vunpack.c.l.b16 %v77
  %v205 = vunpack.c.l.b16 %v78
  %v206 = vunpack.c.l.b16 %v79
  %v207 = vunpack.c.l.b16 %v80
  %v208 = vunpack.c.l.b16 %v81
  %v209 = vunpack.c.l.b16 %v82
  %v210 = vunpack.c.l.b16 %v83
  %v211 = vunpack.c.l.b16 %v84
  %v212 = vunpack.c.l.b16 %v85
  %v213 = vunpack.c.l.b16 %v86
  %v214 = vunpack.c.l.b16 %v87
  %v215 = vunpack.c.l.b16 %v88
  %v216 = vunpack.c.l.b16 %v89
  %v217 = vpack.c.b16 %v202, %v201
  %v218 = vpack.c.b16 %v204, %v203
  %v219 = vpack.c.b16 %v206, %v205
  %v220 = vpack.c.b16 %v208, %v207
  %v221 = vpack.c.b16 %v210, %v209
  %v222 = vpack.c.b16 %v212, %v211
  %v223 = vpack.c.b16 %v214, %v213
  %v224 = vpack.c.b16 %v216, %v215
  %233 = vmatprep.subr.bf16.mxu0 0
  %234 = vmatpush1.bf16.msra.mxu0 %v224
  %235 = vmatprep.subr.bf16.mxu0 0
  %236 = vmatpush1.bf16.msra.mxu0 %v223
  %237 = vmatprep.subr.bf16.mxu0 0
  %238 = vmatpush1.bf16.msra.mxu0 %v222
  %239 = vmatprep.subr.bf16.mxu0 0
  %240 = vmatpush1.bf16.msra.mxu0 %v221
  %241 = vmatprep.subr.bf16.mxu0 0
  %242 = vmatpush1.bf16.msra.mxu0 %v220
  %243 = vmatprep.subr.bf16.mxu0 0
  %244 = vmatpush1.bf16.msra.mxu0 %v219
  %245 = vmatprep.subr.bf16.mxu0 0
  %246 = vmatpush1.bf16.msra.mxu0 %v218
  %247 = vmatprep.subr.bf16.mxu0 0
  %248 = vmatpush1.bf16.msra.mxu0 %v217
  %249 = vmatprep.subr.bf16.mxu0 0
  %250 = vmatpush2.bf16.msra.mxu0 0
  %251 = vmatprep.subr.bf16.mxu0 0
  %252 = vmatpush2.bf16.msra.mxu0 0
  %253 = vmatprep.subr.bf16.mxu0 0
  %254 = vmatpush2.bf16.msra.mxu0 0
  %255 = vmatprep.subr.bf16.mxu0 0
  %256 = vmatpush2.bf16.msra.mxu0 0
  %257 = vmatprep.subr.bf16.mxu0 0
  %258 = vmatpush2.bf16.msra.mxu0 0
  %259 = vmatprep.subr.bf16.mxu0 0
  %260 = vmatpush2.bf16.msra.mxu0 0
  %261 = vmatprep.subr.bf16.mxu0 0
  %262 = vmatpush2.bf16.msra.mxu0 0
  %263 = vmatprep.subr.bf16.mxu0 0
  %264 = vmatpush2.bf16.msra.mxu0 0
  %265 = vmatprep.mubr.bf16.mxu0 0
  %266 = vmatmul.mubr.bf16.gmra.mxu0 %v183
  %v267 = vpop.f32.mrf.mxu0
  %v268 = vadd.f32 0.0, %v267
  %v269 = vpop.f32.mrf.mxu0
  %v270 = vpop.f32.mrf.mxu0
  %v271 = vadd.f32 0.0, %v270
  %v272 = vpop.f32.mrf.mxu0
  %273 = vmatprep.mubr.bf16.mxu0 0
  %274 = vmatmul.mubr.bf16.gmra.mxu0 %v184
  %v275 = vpop.f32.mrf.mxu0
  %v276 = vadd.f32 0.0, %v275
  %v277 = vpop.f32.mrf.mxu0
  %v278 = vpop.f32.mrf.mxu0
  %v279 = vadd.f32 0.0, %v278
  %v280 = vpop.f32.mrf.mxu0
  %281 = vdwg.mxu0
  %v282 = vpack.c.bf16 %v69, %v68
  %v283 = vpack.c.bf16 %v71, %v70
  %284 = vmatprep.subr.bf16.mxu0 0
  %285 = vmatpush1.bf16.msra.mxu0 0
  %286 = vmatprep.subr.bf16.mxu0 0
  %287 = vmatpush1.bf16.msra.mxu0 0
  %288 = vmatprep.subr.bf16.mxu0 0
  %289 = vmatpush1.bf16.msra.mxu0 0
  %290 = vmatprep.subr.bf16.mxu0 0
  %291 = vmatpush1.bf16.msra.mxu0 0
  %292 = vmatprep.subr.bf16.mxu0 0
  %293 = vmatpush1.bf16.msra.mxu0 0
  %294 = vmatprep.subr.bf16.mxu0 0
  %295 = vmatpush1.bf16.msra.mxu0 0
  %296 = vmatprep.subr.bf16.mxu0 0
  %297 = vmatpush1.bf16.msra.mxu0 0
  %298 = vmatprep.subr.bf16.mxu0 0
  %299 = vmatpush1.bf16.msra.mxu0 %v282
  %300 = vmatprep.subr.bf16.mxu0 0
  %301 = vmatpush2.bf16.msra.mxu0 0
  %302 = vmatprep.subr.bf16.mxu0 0
  %303 = vmatpush2.bf16.msra.mxu0 0
  %304 = vmatprep.subr.bf16.mxu0 0
  %305 = vmatpush2.bf16.msra.mxu0 0
  %306 = vmatprep.subr.bf16.mxu0 0
  %307 = vmatpush2.bf16.msra.mxu0 0
  %308 = vmatprep.subr.bf16.mxu0 0
  %309 = vmatpush2.bf16.msra.mxu0 0
  %310 = vmatprep.subr.bf16.mxu0 0
  %311 = vmatpush2.bf16.msra.mxu0 0
  %312 = vmatprep.subr.bf16.mxu0 0
  %313 = vmatpush2.bf16.msra.mxu0 0
  %314 = vmatprep.subr.bf16.mxu0 0
  %315 = vmatpush2.bf16.msra.mxu0 0
  %316 = vmatprep.mubr.bf16.mxu0 0
  %317 = vmatmul.mubr.bf16.gmra.mxu0 %v99
  %v318 = vpop.f32.mrf.mxu0
  %v319 = vadd.f32 0.0, %v318
  %v320 = vpop.f32.mrf.mxu0
  %v321 = vpop.f32.mrf.mxu0
  %v322 = vadd.f32 0.0, %v321
  %v323 = vpop.f32.mrf.mxu0
  %324 = vdwg.mxu0
  %325 = vmatprep.subr.bf16.mxu0 0
  %326 = vmatpush1.bf16.msra.mxu0 0
  %327 = vmatprep.subr.bf16.mxu0 0
  %328 = vmatpush1.bf16.msra.mxu0 0
  %329 = vmatprep.subr.bf16.mxu0 0
  %330 = vmatpush1.bf16.msra.mxu0 0
  %331 = vmatprep.subr.bf16.mxu0 0
  %332 = vmatpush1.bf16.msra.mxu0 0
  %333 = vmatprep.subr.bf16.mxu0 0
  %334 = vmatpush1.bf16.msra.mxu0 0
  %335 = vmatprep.subr.bf16.mxu0 0
  %336 = vmatpush1.bf16.msra.mxu0 0
  %337 = vmatprep.subr.bf16.mxu0 0
  %338 = vmatpush1.bf16.msra.mxu0 0
  %339 = vmatprep.subr.bf16.mxu0 0
  %340 = vmatpush1.bf16.msra.mxu0 %v283
  %341 = vmatprep.subr.bf16.mxu0 0
  %342 = vmatpush2.bf16.msra.mxu0 0
  %343 = vmatprep.subr.bf16.mxu0 0
  %344 = vmatpush2.bf16.msra.mxu0 0
  %345 = vmatprep.subr.bf16.mxu0 0
  %346 = vmatpush2.bf16.msra.mxu0 0
  %347 = vmatprep.subr.bf16.mxu0 0
  %348 = vmatpush2.bf16.msra.mxu0 0
  %349 = vmatprep.subr.bf16.mxu0 0
  %350 = vmatpush2.bf16.msra.mxu0 0
  %351 = vmatprep.subr.bf16.mxu0 0
  %352 = vmatpush2.bf16.msra.mxu0 0
  %353 = vmatprep.subr.bf16.mxu0 0
  %354 = vmatpush2.bf16.msra.mxu0 0
  %355 = vmatprep.subr.bf16.mxu0 0
  %356 = vmatpush2.bf16.msra.mxu0 0
  %357 = vmatprep.mubr.bf16.mxu0 0
  %358 = vmatmul.mubr.bf16.gmra.mxu0 %v99
  %v359 = vpop.f32.mrf.mxu0
  %v360 = vadd.f32 0.0, %v359
  %v361 = vpop.f32.mrf.mxu0
  %v362 = vpop.f32.mrf.mxu0
  %v363 = vadd.f32 0.0, %v362
  %v364 = vpop.f32.mrf.mxu0
  %365 = vdwg.mxu0
  %v366 = vpack.c.bf16 %v322, %v319
  %v367 = vpack.c.bf16 %v363, %v360
  %368 = vmatprep.subr.bf16.mxu0 0
  %369 = vmatpush1.bf16.msra.mxu0 %v224
  %370 = vmatprep.subr.bf16.mxu0 0
  %371 = vmatpush1.bf16.msra.mxu0 %v223
  %372 = vmatprep.subr.bf16.mxu0 0
  %373 = vmatpush1.bf16.msra.mxu0 %v222
  %374 = vmatprep.subr.bf16.mxu0 0
  %375 = vmatpush1.bf16.msra.mxu0 %v221
  %376 = vmatprep.subr.bf16.mxu0 0
  %377 = vmatpush1.bf16.msra.mxu0 %v220
  %378 = vmatprep.subr.bf16.mxu0 0
  %379 = vmatpush1.bf16.msra.mxu0 %v219
  %380 = vmatprep.subr.bf16.mxu0 0
  %381 = vmatpush1.bf16.msra.mxu0 %v218
  %382 = vmatprep.subr.bf16.mxu0 0
  %383 = vmatpush1.bf16.msra.mxu0 %v217
  %384 = vmatprep.subr.bf16.mxu0 0
  %385 = vmatpush2.bf16.msra.mxu0 0
  %386 = vmatprep.subr.bf16.mxu0 0
  %387 = vmatpush2.bf16.msra.mxu0 0
  %388 = vmatprep.subr.bf16.mxu0 0
  %389 = vmatpush2.bf16.msra.mxu0 0
  %390 = vmatprep.subr.bf16.mxu0 0
  %391 = vmatpush2.bf16.msra.mxu0 0
  %392 = vmatprep.subr.bf16.mxu0 0
  %393 = vmatpush2.bf16.msra.mxu0 0
  %394 = vmatprep.subr.bf16.mxu0 0
  %395 = vmatpush2.bf16.msra.mxu0 0
  %396 = vmatprep.subr.bf16.mxu0 0
  %397 = vmatpush2.bf16.msra.mxu0 0
  %398 = vmatprep.subr.bf16.mxu0 0
  %399 = vmatpush2.bf16.msra.mxu0 0
  %400 = vmatprep.mubr.bf16.mxu0 0
  %401 = vmatmul.mubr.bf16.gmra.mxu0 %v366
  %v402 = vpop.f32.mrf.mxu0
  %v403 = vadd.f32 0.0, %v402
  %v404 = vpop.f32.mrf.mxu0
  %v405 = vpop.f32.mrf.mxu0
  %v406 = vadd.f32 0.0, %v405
  %v407 = vpop.f32.mrf.mxu0
  %408 = vmatprep.mubr.bf16.mxu0 0
  %409 = vmatmul.mubr.bf16.gmra.mxu0 %v367
  %v410 = vpop.f32.mrf.mxu0
  %v411 = vadd.f32 0.0, %v410
  %v412 = vpop.f32.mrf.mxu0
  %v413 = vpop.f32.mrf.mxu0
  %v414 = vadd.f32 0.0, %v413
  %v415 = vpop.f32.mrf.mxu0
  %416 = vdwg.mxu0
  %v417 = vmul.f32 %v268, %v268
  %v418 = vmul.f32 %v271, %v271
  %v419 = vmul.f32 %v276, %v276
  %v420 = vmul.f32 %v279, %v279
  %v421 = vmul.f32 %v403, %v403
  %v422 = vmul.f32 %v406, %v406
  %v423 = vmul.f32 %v411, %v411
  %v424 = vmul.f32 %v414, %v414
  %v425 = vmul.f32 %v268, %v403
  %v426 = vmul.f32 %v271, %v406
  %v427 = vmul.f32 %v276, %v411
  %v428 = vmul.f32 %v279, %v414
  %v429 = vmul.f32 %v64, %v64
  %v430 = vmul.f32 %v65, %v65
  %v431 = vmul.f32 %v66, %v66
  %v432 = vmul.f32 %v67, %v67
  %v433 = vpack.c.bf16 %v430, %v429
  %v434 = vpack.c.bf16 %v432, %v431
  %435 = vmatprep.subr.bf16.mxu0 0
  %436 = vmatpush1.bf16.msra.mxu0 0
  %437 = vmatprep.subr.bf16.mxu0 0
  %438 = vmatpush1.bf16.msra.mxu0 0
  %439 = vmatprep.subr.bf16.mxu0 0
  %440 = vmatpush1.bf16.msra.mxu0 0
  %441 = vmatprep.subr.bf16.mxu0 0
  %442 = vmatpush1.bf16.msra.mxu0 0
  %443 = vmatprep.subr.bf16.mxu0 0
  %444 = vmatpush1.bf16.msra.mxu0 0
  %445 = vmatprep.subr.bf16.mxu0 0
  %446 = vmatpush1.bf16.msra.mxu0 0
  %447 = vmatprep.subr.bf16.mxu0 0
  %448 = vmatpush1.bf16.msra.mxu0 0
  %449 = vmatprep.subr.bf16.mxu0 0
  %450 = vmatpush1.bf16.msra.mxu0 %v433
  %451 = vmatprep.subr.bf16.mxu0 0
  %452 = vmatpush2.bf16.msra.mxu0 0
  %453 = vmatprep.subr.bf16.mxu0 0
  %454 = vmatpush2.bf16.msra.mxu0 0
  %455 = vmatprep.subr.bf16.mxu0 0
  %456 = vmatpush2.bf16.msra.mxu0 0
  %457 = vmatprep.subr.bf16.mxu0 0
  %458 = vmatpush2.bf16.msra.mxu0 0
  %459 = vmatprep.subr.bf16.mxu0 0
  %460 = vmatpush2.bf16.msra.mxu0 0
  %461 = vmatprep.subr.bf16.mxu0 0
  %462 = vmatpush2.bf16.msra.mxu0 0
  %463 = vmatprep.subr.bf16.mxu0 0
  %464 = vmatpush2.bf16.msra.mxu0 0
  %465 = vmatprep.subr.bf16.mxu0 0
  %466 = vmatpush2.bf16.msra.mxu0 0
  %467 = vmatprep.mubr.bf16.mxu0 0
  %468 = vmatmul.mubr.bf16.gmra.mxu0 %v99
  %v469 = vpop.f32.mrf.mxu0
  %v470 = vadd.f32 0.0, %v469
  %v471 = vpop.f32.mrf.mxu0
  %v472 = vpop.f32.mrf.mxu0
  %v473 = vadd.f32 0.0, %v472
  %v474 = vpop.f32.mrf.mxu0
  %475 = vdwg.mxu0
  %476 = vmatprep.subr.bf16.mxu0 0
  %477 = vmatpush1.bf16.msra.mxu0 0
  %478 = vmatprep.subr.bf16.mxu0 0
  %479 = vmatpush1.bf16.msra.mxu0 0
  %480 = vmatprep.subr.bf16.mxu0 0
  %481 = vmatpush1.bf16.msra.mxu0 0
  %482 = vmatprep.subr.bf16.mxu0 0
  %483 = vmatpush1.bf16.msra.mxu0 0
  %484 = vmatprep.subr.bf16.mxu0 0
  %485 = vmatpush1.bf16.msra.mxu0 0
  %486 = vmatprep.subr.bf16.mxu0 0
  %487 = vmatpush1.bf16.msra.mxu0 0
  %488 = vmatprep.subr.bf16.mxu0 0
  %489 = vmatpush1.bf16.msra.mxu0 0
  %490 = vmatprep.subr.bf16.mxu0 0
  %491 = vmatpush1.bf16.msra.mxu0 %v434
  %492 = vmatprep.subr.bf16.mxu0 0
  %493 = vmatpush2.bf16.msra.mxu0 0
  %494 = vmatprep.subr.bf16.mxu0 0
  %495 = vmatpush2.bf16.msra.mxu0 0
  %496 = vmatprep.subr.bf16.mxu0 0
  %497 = vmatpush2.bf16.msra.mxu0 0
  %498 = vmatprep.subr.bf16.mxu0 0
  %499 = vmatpush2.bf16.msra.mxu0 0
  %500 = vmatprep.subr.bf16.mxu0 0
  %501 = vmatpush2.bf16.msra.mxu0 0
  %502 = vmatprep.subr.bf16.mxu0 0
  %503 = vmatpush2.bf16.msra.mxu0 0
  %504 = vmatprep.subr.bf16.mxu0 0
  %505 = vmatpush2.bf16.msra.mxu0 0
  %506 = vmatprep.subr.bf16.mxu0 0
  %507 = vmatpush2.bf16.msra.mxu0 0
  %508 = vmatprep.mubr.bf16.mxu0 0
  %509 = vmatmul.mubr.bf16.gmra.mxu0 %v99
  %v510 = vpop.f32.mrf.mxu0
  %v511 = vadd.f32 0.0, %v510
  %v512 = vpop.f32.mrf.mxu0
  %v513 = vpop.f32.mrf.mxu0
  %v514 = vadd.f32 0.0, %v513
  %v515 = vpop.f32.mrf.mxu0
  %516 = vdwg.mxu0
  %v517 = vpack.c.bf16 %v473, %v470
  %v518 = vpack.c.bf16 %v514, %v511
  %519 = vmatprep.subr.bf16.mxu0 0
  %520 = vmatpush1.bf16.msra.mxu0 %v224
  %521 = vmatprep.subr.bf16.mxu0 0
  %522 = vmatpush1.bf16.msra.mxu0 %v223
  %523 = vmatprep.subr.bf16.mxu0 0
  %524 = vmatpush1.bf16.msra.mxu0 %v222
  %525 = vmatprep.subr.bf16.mxu0 0
  %526 = vmatpush1.bf16.msra.mxu0 %v221
  %527 = vmatprep.subr.bf16.mxu0 0
  %528 = vmatpush1.bf16.msra.mxu0 %v220
  %529 = vmatprep.subr.bf16.mxu0 0
  %530 = vmatpush1.bf16.msra.mxu0 %v219
  %531 = vmatprep.subr.bf16.mxu0 0
  %532 = vmatpush1.bf16.msra.mxu0 %v218
  %533 = vmatprep.subr.bf16.mxu0 0
  %534 = vmatpush1.bf16.msra.mxu0 %v217
  %535 = vmatprep.subr.bf16.mxu0 0
  %536 = vmatpush2.bf16.msra.mxu0 0
  %537 = vmatprep.subr.bf16.mxu0 0
  %538 = vmatpush2.bf16.msra.mxu0 0
  %539 = vmatprep.subr.bf16.mxu0 0
  %540 = vmatpush2.bf16.msra.mxu0 0
  %541 = vmatprep.subr.bf16.mxu0 0
  %542 = vmatpush2.bf16.msra.mxu0 0
  %543 = vmatprep.subr.bf16.mxu0 0
  %544 = vmatpush2.bf16.msra.mxu0 0
  %545 = vmatprep.subr.bf16.mxu0 0
  %546 = vmatpush2.bf16.msra.mxu0 0
  %547 = vmatprep.subr.bf16.mxu0 0
  %548 = vmatpush2.bf16.msra.mxu0 0
  %549 = vmatprep.subr.bf16.mxu0 0
  %550 = vmatpush2.bf16.msra.mxu0 0
  %551 = vmatprep.mubr.bf16.mxu0 0
  %552 = vmatmul.mubr.bf16.gmra.mxu0 %v517
  %v553 = vpop.f32.mrf.mxu0
  %v554 = vadd.f32 0.0, %v553
  %v555 = vpop.f32.mrf.mxu0
  %v556 = vpop.f32.mrf.mxu0
  %v557 = vadd.f32 0.0, %v556
  %v558 = vpop.f32.mrf.mxu0
  %559 = vmatprep.mubr.bf16.mxu0 0
  %560 = vmatmul.mubr.bf16.gmra.mxu0 %v518
  %v561 = vpop.f32.mrf.mxu0
  %v562 = vadd.f32 0.0, %v561
  %v563 = vpop.f32.mrf.mxu0
  %v564 = vpop.f32.mrf.mxu0
  %v565 = vadd.f32 0.0, %v564
  %v566 = vpop.f32.mrf.mxu0
  %567 = vdwg.mxu0
  %v568 = vsub.f32 %v554, %v417
  %v569 = vsub.f32 %v557, %v418
  %v570 = vsub.f32 %v562, %v419
  %v571 = vsub.f32 %v565, %v420
  %v572 = vmul.f32 %v68, %v68
  %v573 = vmul.f32 %v69, %v69
  %v574 = vmul.f32 %v70, %v70
  %v575 = vmul.f32 %v71, %v71
  %v576 = vpack.c.bf16 %v573, %v572
  %v577 = vpack.c.bf16 %v575, %v574
  %578 = vmatprep.subr.bf16.mxu0 0
  %579 = vmatpush1.bf16.msra.mxu0 0
  %580 = vmatprep.subr.bf16.mxu0 0
  %581 = vmatpush1.bf16.msra.mxu0 0
  %582 = vmatprep.subr.bf16.mxu0 0
  %583 = vmatpush1.bf16.msra.mxu0 0
  %584 = vmatprep.subr.bf16.mxu0 0
  %585 = vmatpush1.bf16.msra.mxu0 0
  %586 = vmatprep.subr.bf16.mxu0 0
  %587 = vmatpush1.bf16.msra.mxu0 0
  %588 = vmatprep.subr.bf16.mxu0 0
  %589 = vmatpush1.bf16.msra.mxu0 0
  %590 = vmatprep.subr.bf16.mxu0 0
  %591 = vmatpush1.bf16.msra.mxu0 0
  %592 = vmatprep.subr.bf16.mxu0 0
  %593 = vmatpush1.bf16.msra.mxu0 %v576
  %594 = vmatprep.subr.bf16.mxu0 0
  %595 = vmatpush2.bf16.msra.mxu0 0
  %596 = vmatprep.subr.bf16.mxu0 0
  %597 = vmatpush2.bf16.msra.mxu0 0
  %598 = vmatprep.subr.bf16.mxu0 0
  %599 = vmatpush2.bf16.msra.mxu0 0
  %600 = vmatprep.subr.bf16.mxu0 0
  %601 = vmatpush2.bf16.msra.mxu0 0
  %602 = vmatprep.subr.bf16.mxu0 0
  %603 = vmatpush2.bf16.msra.mxu0 0
  %604 = vmatprep.subr.bf16.mxu0 0
  %605 = vmatpush2.bf16.msra.mxu0 0
  %606 = vmatprep.subr.bf16.mxu0 0
  %607 = vmatpush2.bf16.msra.mxu0 0
  %608 = vmatprep.subr.bf16.mxu0 0
  %609 = vmatpush2.bf16.msra.mxu0 0
  %610 = vmatprep.mubr.bf16.mxu0 0
  %611 = vmatmul.mubr.bf16.gmra.mxu0 %v99
  %v612 = vpop.f32.mrf.mxu0
  %v613 = vadd.f32 0.0, %v612
  %v614 = vpop.f32.mrf.mxu0
  %v615 = vpop.f32.mrf.mxu0
  %v616 = vadd.f32 0.0, %v615
  %v617 = vpop.f32.mrf.mxu0
  %618 = vdwg.mxu0
  %619 = vmatprep.subr.bf16.mxu0 0
  %620 = vmatpush1.bf16.msra.mxu0 0
  %621 = vmatprep.subr.bf16.mxu0 0
  %622 = vmatpush1.bf16.msra.mxu0 0
  %623 = vmatprep.subr.bf16.mxu0 0
  %624 = vmatpush1.bf16.msra.mxu0 0
  %625 = vmatprep.subr.bf16.mxu0 0
  %626 = vmatpush1.bf16.msra.mxu0 0
  %627 = vmatprep.subr.bf16.mxu0 0
  %628 = vmatpush1.bf16.msra.mxu0 0
  %629 = vmatprep.subr.bf16.mxu0 0
  %630 = vmatpush1.bf16.msra.mxu0 0
  %631 = vmatprep.subr.bf16.mxu0 0
  %632 = vmatpush1.bf16.msra.mxu0 0
  %633 = vmatprep.subr.bf16.mxu0 0
  %634 = vmatpush1.bf16.msra.mxu0 %v577
  %635 = vmatprep.subr.bf16.mxu0 0
  %636 = vmatpush2.bf16.msra.mxu0 0
  %637 = vmatprep.subr.bf16.mxu0 0
  %638 = vmatpush2.bf16.msra.mxu0 0
  %639 = vmatprep.subr.bf16.mxu0 0
  %640 = vmatpush2.bf16.msra.mxu0 0
  %641 = vmatprep.subr.bf16.mxu0 0
  %642 = vmatpush2.bf16.msra.mxu0 0
  %643 = vmatprep.subr.bf16.mxu0 0
  %644 = vmatpush2.bf16.msra.mxu0 0
  %645 = vmatprep.subr.bf16.mxu0 0
  %646 = vmatpush2.bf16.msra.mxu0 0
  %647 = vmatprep.subr.bf16.mxu0 0
  %648 = vmatpush2.bf16.msra.mxu0 0
  %649 = vmatprep.subr.bf16.mxu0 0
  %650 = vmatpush2.bf16.msra.mxu0 0
  %651 = vmatprep.mubr.bf16.mxu0 0
  %652 = vmatmul.mubr.bf16.gmra.mxu0 %v99
  %v653 = vpop.f32.mrf.mxu0
  %v654 = vadd.f32 0.0, %v653
  %v655 = vpop.f32.mrf.mxu0
  %v656 = vpop.f32.mrf.mxu0
  %v657 = vadd.f32 0.0, %v656
  %v658 = vpop.f32.mrf.mxu0
  %659 = vdwg.mxu0
  %v660 = vpack.c.bf16 %v616, %v613
  %v661 = vpack.c.bf16 %v657, %v654
  %662 = vmatprep.subr.bf16.mxu0 0
  %663 = vmatpush1.bf16.msra.mxu0 %v224
  %664 = vmatprep.subr.bf16.mxu0 0
  %665 = vmatpush1.bf16.msra.mxu0 %v223
  %666 = vmatprep.subr.bf16.mxu0 0
  %667 = vmatpush1.bf16.msra.mxu0 %v222
  %668 = vmatprep.subr.bf16.mxu0 0
  %669 = vmatpush1.bf16.msra.mxu0 %v221
  %670 = vmatprep.subr.bf16.mxu0 0
  %671 = vmatpush1.bf16.msra.mxu0 %v220
  %672 = vmatprep.subr.bf16.mxu0 0
  %673 = vmatpush1.bf16.msra.mxu0 %v219
  %674 = vmatprep.subr.bf16.mxu0 0
  %675 = vmatpush1.bf16.msra.mxu0 %v218
  %676 = vmatprep.subr.bf16.mxu0 0
  %677 = vmatpush1.bf16.msra.mxu0 %v217
  %678 = vmatprep.subr.bf16.mxu0 0
  %679 = vmatpush2.bf16.msra.mxu0 0
  %680 = vmatprep.subr.bf16.mxu0 0
  %681 = vmatpush2.bf16.msra.mxu0 0
  %682 = vmatprep.subr.bf16.mxu0 0
  %683 = vmatpush2.bf16.msra.mxu0 0
  %684 = vmatprep.subr.bf16.mxu0 0
  %685 = vmatpush2.bf16.msra.mxu0 0
  %686 = vmatprep.subr.bf16.mxu0 0
  %687 = vmatpush2.bf16.msra.mxu0 0
  %688 = vmatprep.subr.bf16.mxu0 0
  %689 = vmatpush2.bf16.msra.mxu0 0
  %690 = vmatprep.subr.bf16.mxu0 0
  %691 = vmatpush2.bf16.msra.mxu0 0
  %692 = vmatprep.subr.bf16.mxu0 0
  %693 = vmatpush2.bf16.msra.mxu0 0
  %694 = vmatprep.mubr.bf16.mxu0 0
  %695 = vmatmul.mubr.bf16.gmra.mxu0 %v660
  %v696 = vpop.f32.mrf.mxu0
  %v697 = vadd.f32 0.0, %v696
  %v698 = vpop.f32.mrf.mxu0
  %v699 = vpop.f32.mrf.mxu0
  %v700 = vadd.f32 0.0, %v699
  %v701 = vpop.f32.mrf.mxu0
  %702 = vmatprep.mubr.bf16.mxu0 0
  %703 = vmatmul.mubr.bf16.gmra.mxu0 %v661
  %v704 = vpop.f32.mrf.mxu0
  %v705 = vadd.f32 0.0, %v704
  %v706 = vpop.f32.mrf.mxu0
  %v707 = vpop.f32.mrf.mxu0
  %v708 = vadd.f32 0.0, %v707
  %v709 = vpop.f32.mrf.mxu0
  %710 = vdwg.mxu0
  %v711 = vsub.f32 %v697, %v421
  %v712 = vsub.f32 %v700, %v422
  %v713 = vsub.f32 %v705, %v423
  %v714 = vsub.f32 %v708, %v424
  %v715 = vmul.f32 %v64, %v68
  %v716 = vmul.f32 %v65, %v69
  %v717 = vmul.f32 %v66, %v70
  %v718 = vmul.f32 %v67, %v71
  %v719 = vpack.c.bf16 %v716, %v715
  %v720 = vpack.c.bf16 %v718, %v717
  %721 = vmatprep.subr.bf16.mxu0 0
  %722 = vmatpush1.bf16.msra.mxu0 0
  %723 = vmatprep.subr.bf16.mxu0 0
  %724 = vmatpush1.bf16.msra.mxu0 0
  %725 = vmatprep.subr.bf16.mxu0 0
  %726 = vmatpush1.bf16.msra.mxu0 0
  %727 = vmatprep.subr.bf16.mxu0 0
  %728 = vmatpush1.bf16.msra.mxu0 0
  %729 = vmatprep.subr.bf16.mxu0 0
  %730 = vmatpush1.bf16.msra.mxu0 0
  %731 = vmatprep.subr.bf16.mxu0 0
  %732 = vmatpush1.bf16.msra.mxu0 0
  %733 = vmatprep.subr.bf16.mxu0 0
  %734 = vmatpush1.bf16.msra.mxu0 0
  %735 = vmatprep.subr.bf16.mxu0 0
  %736 = vmatpush1.bf16.msra.mxu0 %v719
  %737 = vmatprep.subr.bf16.mxu0 0
  %738 = vmatpush2.bf16.msra.mxu0 0
  %739 = vmatprep.subr.bf16.mxu0 0
  %740 = vmatpush2.bf16.msra.mxu0 0
  %741 = vmatprep.subr.bf16.mxu0 0
  %742 = vmatpush2.bf16.msra.mxu0 0
  %743 = vmatprep.subr.bf16.mxu0 0
  %744 = vmatpush2.bf16.msra.mxu0 0
  %745 = vmatprep.subr.bf16.mxu0 0
  %746 = vmatpush2.bf16.msra.mxu0 0
  %747 = vmatprep.subr.bf16.mxu0 0
  %748 = vmatpush2.bf16.msra.mxu0 0
  %749 = vmatprep.subr.bf16.mxu0 0
  %750 = vmatpush2.bf16.msra.mxu0 0
  %751 = vmatprep.subr.bf16.mxu0 0
  %752 = vmatpush2.bf16.msra.mxu0 0
  %753 = vmatprep.mubr.bf16.mxu0 0
  %754 = vmatmul.mubr.bf16.gmra.mxu0 %v99
  %v755 = vpop.f32.mrf.mxu0
  %v756 = vadd.f32 0.0, %v755
  %v757 = vpop.f32.mrf.mxu0
  %v758 = vpop.f32.mrf.mxu0
  %v759 = vadd.f32 0.0, %v758
  %v760 = vpop.f32.mrf.mxu0
  %761 = vdwg.mxu0
  %762 = vmatprep.subr.bf16.mxu0 0
  %763 = vmatpush1.bf16.msra.mxu0 0
  %764 = vmatprep.subr.bf16.mxu0 0
  %765 = vmatpush1.bf16.msra.mxu0 0
  %766 = vmatprep.subr.bf16.mxu0 0
  %767 = vmatpush1.bf16.msra.mxu0 0
  %768 = vmatprep.subr.bf16.mxu0 0
  %769 = vmatpush1.bf16.msra.mxu0 0
  %770 = vmatprep.subr.bf16.mxu0 0
  %771 = vmatpush1.bf16.msra.mxu0 0
  %772 = vmatprep.subr.bf16.mxu0 0
  %773 = vmatpush1.bf16.msra.mxu0 0
  %774 = vmatprep.subr.bf16.mxu0 0
  %775 = vmatpush1.bf16.msra.mxu0 0
  %776 = vmatprep.subr.bf16.mxu0 0
  %777 = vmatpush1.bf16.msra.mxu0 %v720
  %778 = vmatprep.subr.bf16.mxu0 0
  %779 = vmatpush2.bf16.msra.mxu0 0
  %780 = vmatprep.subr.bf16.mxu0 0
  %781 = vmatpush2.bf16.msra.mxu0 0
  %782 = vmatprep.subr.bf16.mxu0 0
  %783 = vmatpush2.bf16.msra.mxu0 0
  %784 = vmatprep.subr.bf16.mxu0 0
  %785 = vmatpush2.bf16.msra.mxu0 0
  %786 = vmatprep.subr.bf16.mxu0 0
  %787 = vmatpush2.bf16.msra.mxu0 0
  %788 = vmatprep.subr.bf16.mxu0 0
  %789 = vmatpush2.bf16.msra.mxu0 0
  %790 = vmatprep.subr.bf16.mxu0 0
  %791 = vmatpush2.bf16.msra.mxu0 0
  %792 = vmatprep.subr.bf16.mxu0 0
  %793 = vmatpush2.bf16.msra.mxu0 0
  %794 = vmatprep.mubr.bf16.mxu0 0
  %795 = vmatmul.mubr.bf16.gmra.mxu0 %v99
  %v796 = vpop.f32.mrf.mxu0
  %v797 = vadd.f32 0.0, %v796
  %v798 = vpop.f32.mrf.mxu0
  %v799 = vpop.f32.mrf.mxu0
  %v800 = vadd.f32 0.0, %v799
  %v801 = vpop.f32.mrf.mxu0
  %802 = vdwg.mxu0
  %v803 = vpack.c.bf16 %v759, %v756
  %v804 = vpack.c.bf16 %v800, %v797
  %805 = vmatprep.subr.bf16.mxu0 0
  %806 = vmatpush1.bf16.msra.mxu0 %v224
  %807 = vmatprep.subr.bf16.mxu0 0
  %808 = vmatpush1.bf16.msra.mxu0 %v223
  %809 = vmatprep.subr.bf16.mxu0 0
  %810 = vmatpush1.bf16.msra.mxu0 %v222
  %811 = vmatprep.subr.bf16.mxu0 0
  %812 = vmatpush1.bf16.msra.mxu0 %v221
  %813 = vmatprep.subr.bf16.mxu0 0
  %814 = vmatpush1.bf16.msra.mxu0 %v220
  %815 = vmatprep.subr.bf16.mxu0 0
  %816 = vmatpush1.bf16.msra.mxu0 %v219
  %817 = vmatprep.subr.bf16.mxu0 0
  %818 = vmatpush1.bf16.msra.mxu0 %v218
  %819 = vmatprep.subr.bf16.mxu0 0
  %820 = vmatpush1.bf16.msra.mxu0 %v217
  %821 = vmatprep.subr.bf16.mxu0 0
  %822 = vmatpush2.bf16.msra.mxu0 0
  %823 = vmatprep.subr.bf16.mxu0 0
  %824 = vmatpush2.bf16.msra.mxu0 0
  %825 = vmatprep.subr.bf16.mxu0 0
  %826 = vmatpush2.bf16.msra.mxu0 0
  %827 = vmatprep.subr.bf16.mxu0 0
  %828 = vmatpush2.bf16.msra.mxu0 0
  %829 = vmatprep.subr.bf16.mxu0 0
  %830 = vmatpush2.bf16.msra.mxu0 0
  %831 = vmatprep.subr.bf16.mxu0 0
  %832 = vmatpush2.bf16.msra.mxu0 0
  %833 = vmatprep.subr.bf16.mxu0 0
  %834 = vmatpush2.bf16.msra.mxu0 0
  %835 = vmatprep.subr.bf16.mxu0 0
  %836 = vmatpush2.bf16.msra.mxu0 0
  %837 = vmatprep.mubr.bf16.mxu0 0
  %838 = vmatmul.mubr.bf16.gmra.mxu0 %v803
  %v839 = vpop.f32.mrf.mxu0
  %v840 = vadd.f32 0.0, %v839
  %v841 = vpop.f32.mrf.mxu0
  %v842 = vpop.f32.mrf.mxu0
  %v843 = vadd.f32 0.0, %v842
  %v844 = vpop.f32.mrf.mxu0
  %845 = vmatprep.mubr.bf16.mxu0 0
  %846 = vmatmul.mubr.bf16.gmra.mxu0 %v804
  %v847 = vpop.f32.mrf.mxu0
  %v848 = vadd.f32 0.0, %v847
  %v849 = vpop.f32.mrf.mxu0
  %v850 = vpop.f32.mrf.mxu0
  %v851 = vadd.f32 0.0, %v850
  %v852 = vpop.f32.mrf.mxu0
  %853 = vdwg.mxu0
  %v854 = vsub.f32 %v840, %v425
  %v855 = vsub.f32 %v843, %v426
  %v856 = vsub.f32 %v848, %v427
  %v857 = vsub.f32 %v851, %v428
  %v858 = vmul.f32 %v425, 2.0
  %v859 = vmul.f32 %v426, 2.0
  %v860 = vmul.f32 %v427, 2.0
  %v861 = vmul.f32 %v428, 2.0
  %v862 = vadd.f32 %v858, 0.0001
  %v863 = vadd.f32 %v859, 0.0001
  %v864 = vadd.f32 %v860, 0.0001
  %v865 = vadd.f32 %v861, 0.0001
  %v866 = vmul.f32 %v854, 2.0
  %v867 = vmul.f32 %v855, 2.0
  %v868 = vmul.f32 %v856, 2.0
  %v869 = vmul.f32 %v857, 2.0
  %v870 = vadd.f32 %v866, 0.0009
  %v871 = vadd.f32 %v867, 0.0009
  %v872 = vadd.f32 %v868, 0.0009
  %v873 = vadd.f32 %v869, 0.0009
  %v874 = vmul.f32 %v862, %v870
  %v875 = vmul.f32 %v863, %v871
  %v876 = vmul.f32 %v864, %v872
  %v877 = vmul.f32 %v865, %v873
  %v878 = vadd.f32 %v417, %v421
  %v879 = vadd.f32 %v418, %v422
  %v880 = vadd.f32 %v419, %v423
  %v881 = vadd.f32 %v420, %v424
  %v882 = vadd.f32 %v878, 0.0001
  %v883 = vadd.f32 %v879, 0.0001
  %v884 = vadd.f32 %v880, 0.0001
  %v885 = vadd.f32 %v881, 0.0001
  %v886 = vadd.f32 %v568, %v711
  %v887 = vadd.f32 %v569, %v712
  %v888 = vadd.f32 %v570, %v713
  %v889 = vadd.f32 %v571, %v714
  %v890 = vadd.f32 %v886, 0.0009
  %v891 = vadd.f32 %v887, 0.0009
  %v892 = vadd.f32 %v888, 0.0009
  %v893 = vadd.f32 %v889, 0.0009
  %v894 = vmul.f32 %v882, %v890
  %v895 = vmul.f32 %v883, %v891
  %v896 = vmul.f32 %v884, %v892
  %v897 = vmul.f32 %v885, %v893
  %v898 = vrcp.pop %v894
  %v899 = vmul.f32 %v874, %v898
  %v900 = vrcp.pop %v895
  %v901 = vmul.f32 %v875, %v900
  %v902 = vrcp.pop %v896
  %v903 = vmul.f32 %v876, %v902
  %v904 = vrcp.pop %v897
  %v905 = vmul.f32 %v877, %v904
  %v906 = vsub.f32 1.0, %v899
  %v907 = vsub.f32 1.0, %v901
  %v908 = vsub.f32 1.0, %v903
  %v909 = vsub.f32 1.0, %v905
  %v910 = vsel %vm62, %v906, 0.0
  %v911 = vsel %vm63, %v907, 0.0
  %v912 = vsel %vm62, %v908, 0.0
  %v913 = vsel %vm63, %v909, 0.0
  %v914 = vadd.f32 %v910, %v911
  %v915 = vadd.f32 %v914, %v912
  %v916 = vadd.f32 %v915, %v913
  %917 = vst [vmem:[%s4] sm:$0xff] %v916
  // Predicated region
  $region18: #{sod_ssim_loss.1} parent=0 // pred_check
    _
  $region19: #{sod_ssim_loss.1} parent=0 // pred_check_branch
    %919 = sbr.rel (0) target = $region21
  $region20: #{sod_ssim_loss.1} parent=0 // pred_region
    _
  $region21: #{sod_ssim_loss.1} parent=0 // pred_fallthru
    _
  // Predicated region
  $region22: #{sod_ssim_loss.1} parent=0 // pred_check
    _
  $region23: #{sod_ssim_loss.1} parent=0 // pred_check_branch
    %921 = sbr.rel (0) target = $region25
  $region24: #{sod_ssim_loss.1} parent=0 // pred_region
    _
  $region25: #{sod_ssim_loss.1} parent=0 // pred_fallthru
    _

</llo_original>
